<compile_context>
chip_gen: v7x
topology: tpu7x:2x2x1
jax: 0.10.0
libtpu: 0.0.40
codegen_flags: <defaults>
</compile_context>

<pallas_src>
import jax
import jax.numpy as jnp
from jax.experimental import pallas as pl
from jax.experimental.pallas import tpu as pltpu


def _round_up(x, m):
    return ((x + m - 1) // m) * m


# ----------------------------------------------------------------------------
# Single-instance kernel: whole (padded) operands resident in VMEM, no grid.
# ----------------------------------------------------------------------------
def _addmm_kernel(x1_ref, m1_ref, m2_ref, o_ref):
    # MXU matmul with f32 accumulation, then broadcast bias-row add (VPU).
    acc = jnp.dot(m1_ref[...], m2_ref[...], preferred_element_type=jnp.float32)
    bias = x1_ref[...]
    if bias.dtype != jnp.float32:  # avoid a no-op cast when already f32
        bias = bias.astype(jnp.float32)
    o_ref[...] = (acc + bias).astype(o_ref.dtype)


def addmm_cat(x1, m1, m2):
    """v2 = cat([addmm(x1, m1, m2)]) == x1 + m1 @ m2 for a single instance."""
    M, K = m1.shape
    K2, N = m2.shape
    assert K == K2, "inner dims must match for addmm"
    assert x1.shape in ((1, N), (M, N)), "bias must broadcast over rows"

    out_dtype = jnp.result_type(x1.dtype, m1.dtype, m2.dtype)

    # Lane-dense output: pad N to a multiple of 128, M to a multiple of 8.
    Mp = _round_up(M, 8)
    Np = _round_up(N, 128)

    m1p = jnp.pad(m1, ((0, Mp - M), (0, 0))) if Mp != M else m1
    m2p = jnp.pad(m2, ((0, 0), (0, Np - N))) if Np != N else m2
    pad_rows = (Mp - M) if x1.shape[0] == M else 0
    x1p = (jnp.pad(x1, ((0, pad_rows), (0, Np - N)))
           if (Np != N or pad_rows) else x1)

    itemsize = jnp.dtype(m1.dtype).itemsize
    cost = pl.CostEstimate(
        flops=2 * Mp * K * Np,
        transcendentals=0,
        bytes_accessed=(Mp * K + K * Np + x1p.shape[0] * Np) * itemsize
        + Mp * Np * jnp.dtype(out_dtype).itemsize,
    )

    v1p = pl.pallas_call(
        _addmm_kernel,
        out_shape=jax.ShapeDtypeStruct((Mp, Np), out_dtype),
        in_specs=[
            pl.BlockSpec(memory_space=pltpu.MemorySpace.VMEM),
            pl.BlockSpec(memory_space=pltpu.MemorySpace.VMEM),
            pl.BlockSpec(memory_space=pltpu.MemorySpace.VMEM),
        ],
        out_specs=pl.BlockSpec(memory_space=pltpu.MemorySpace.VMEM),
        cost_estimate=cost,
    )(x1p, m1p, m2p)

    # Slice padding off; torch.cat([v1], dim) is an identity -> return v1.
    return v1p[:M, :N] if (Mp != M or Np != N) else v1p


# ----------------------------------------------------------------------------
# Batched path: B independent problems, one pallas_call, grid over batch
# chunks, batch axis marked "parallel" (2x on v7x's two TensorCores).
# ----------------------------------------------------------------------------
def _addmm_batched_kernel(x1_ref, m1_ref, m2_ref, o_ref):
    # (bb, M, K) @ (bb, K, N) -> (bb, M, N) batched MXU matmul, f32 accumulate.
    acc = jnp.einsum(
        "bmk,bkn->bmn", m1_ref[...], m2_ref[...],
        preferred_element_type=jnp.float32,
    )
    bias = x1_ref[...]  # (bb, N) — one bias row per problem
    if bias.dtype != jnp.float32:
        bias = bias.astype(jnp.float32)
    o_ref[...] = (acc + bias[:, None, :]).astype(o_ref.dtype)


def addmm_cat_batched(x1, m1, m2, *, block_b=None):
    """Batched addmm+cat: x1 (B,N), m1 (B,M,K), m2 (B,K,N) -> (B,M,N)."""
    B, M, K = m1.shape
    B2, K2, N = m2.shape
    assert B == B2 and K == K2
    assert x1.shape == (B, N)

    out_dtype = jnp.result_type(x1.dtype, m1.dtype, m2.dtype)

    Mp = _round_up(M, 8)
    Np = _round_up(N, 128)

    # Problems per grid step: multiple of 8 (sublane-aligned x1 block), capped
    # so the per-step working set stays a few MiB (safe under v7x's 32 MiB
    # default scoped VMEM with double-buffering).
    if block_b is None:
        block_b = min(_round_up(B, 8), 64)
    block_b = _round_up(block_b, 8)
    Bp = _round_up(B, block_b)

    m1p = jnp.pad(m1, ((0, Bp - B), (0, Mp - M), (0, 0)))
    m2p = jnp.pad(m2, ((0, Bp - B), (0, 0), (0, Np - N)))
    x1p = jnp.pad(x1, ((0, Bp - B), (0, Np - N)))

    itemsize = jnp.dtype(m1.dtype).itemsize
    cost = pl.CostEstimate(
        flops=2 * Bp * Mp * K * Np,
        transcendentals=0,
        bytes_accessed=Bp * (Mp * K + K * Np + Np) * itemsize
        + Bp * Mp * Np * jnp.dtype(out_dtype).itemsize,
    )

    grid = (Bp // block_b,)
    v1p = pl.pallas_call(
        _addmm_batched_kernel,
        out_shape=jax.ShapeDtypeStruct((Bp, Mp, Np), out_dtype),
        grid_spec=pltpu.PrefetchScalarGridSpec(
            num_scalar_prefetch=0,
            grid=grid,
            in_specs=[
                pl.BlockSpec((block_b, Np), lambda b: (b, 0)),
                pl.BlockSpec((block_b, Mp, K), lambda b: (b, 0, 0)),
                pl.BlockSpec((block_b, K, Np), lambda b: (b, 0, 0)),
            ],
            out_specs=pl.BlockSpec((block_b, Mp, Np), lambda b: (b, 0, 0)),
        ),
        compiler_params=pltpu.CompilerParams(
            dimension_semantics=("parallel",),
        ),
        cost_estimate=cost,
    )(x1p, m1p, m2p)

    out = v1p
    if Bp != B or Mp != M or Np != N:
        out = out[:B, :M, :N]
    return out


if __name__ == "__main__":
    key = jax.random.PRNGKey(0)
    k1, k2, k3, k4, k5, k6 = jax.random.split(key, 6)

    # --- single instance (matches the module's shapes) ---
    M, K, N = 8, 64, 64
    m1 = jax.random.normal(k1, (M, K), dtype=jnp.float32)
    m2 = jax.random.normal(k2, (K, N), dtype=jnp.float32)
    x1 = jax.random.normal(k3, (1, N), dtype=jnp.float32)

    fn = jax.jit(addmm_cat)
    out = fn(x1, m1, m2)
    jax.block_until_ready(out)

    ref = x1 + m1 @ m2
    assert out.shape == (M, N)
    assert out.dtype == ref.dtype
    assert jnp.allclose(out, ref, atol=1e-4, rtol=1e-4)

    # --- batched path (amortizes launch/DMA overhead over B instances) ---
    B = 16
    m1b = jax.random.normal(k4, (B, M, K), dtype=jnp.float32)
    m2b = jax.random.normal(k5, (B, K, N), dtype=jnp.float32)
    x1b = jax.random.normal(k6, (B, N), dtype=jnp.float32)

    fnb = jax.jit(addmm_cat_batched)
    outb = fnb(x1b, m1b, m2b)
    jax.block_until_ready(outb)

    refb = x1b[:, None, :] + jnp.einsum("bmk,bkn->bmn", m1b, m2b)
    assert outb.shape == (B, M, N)
    assert jnp.allclose(outb, refb, atol=1e-4, rtol=1e-4)

    print("KERNEL_OK")
</pallas_src>

<mosaic_0001>
module attributes {stable_mosaic.version = 11 : i64} {
  func.func @_addmm_kernel(%arg0: memref<1x128xf32, #tpu.memory_space<vmem>>, %arg1: memref<8x64xf32, #tpu.memory_space<vmem>>, %arg2: memref<64x128xf32, #tpu.memory_space<vmem>>, %arg3: memref<8x128xf32, #tpu.memory_space<vmem>>) attributes {dimension_semantics = [], scalar_prefetch = 0 : i64, scratch_operands = 0 : i64, tpu.core_type = #tpu.core_type<tc>} {
    %c0 = arith.constant 0 : index
    %c0_0 = arith.constant 0 : index
    %0 = vector.load %arg1[%c0, %c0_0] : memref<8x64xf32, #tpu.memory_space<vmem>>, vector<8x64xf32>
    %c0_1 = arith.constant 0 : index
    %c0_2 = arith.constant 0 : index
    %1 = vector.load %arg2[%c0_1, %c0_2] : memref<64x128xf32, #tpu.memory_space<vmem>>, vector<64x128xf32>
    %cst = arith.constant dense<0.000000e+00> : vector<8x128xf32>
    %2 = tpu.matmul %0, %1, %cst {dimension_numbers = #tpu.dot_dimension_numbers<[1], [0], [0], [1], [0, 0, 1, 1], [], []>} : vector<8x64xf32>, vector<64x128xf32>, vector<8x128xf32> -> vector<8x128xf32>
    %c0_3 = arith.constant 0 : index
    %c0_4 = arith.constant 0 : index
    %3 = vector.load %arg0[%c0_3, %c0_4] : memref<1x128xf32, #tpu.memory_space<vmem>>, vector<1x128xf32>
    %4 = vector.broadcast %3 : vector<1x128xf32> to vector<8x128xf32>
    %5 = arith.addf %2, %4 : vector<8x128xf32>
    %c0_5 = arith.constant 0 : index
    %c0_6 = arith.constant 0 : index
    %6 = vector.load %arg3[%c0_5, %c0_6] : memref<8x128xf32, #tpu.memory_space<vmem>>, vector<8x128xf32>
    tpu.vector_store %arg3[%c0_5, %c0_6], %5 {strides = array<i32>} : memref<8x128xf32, #tpu.memory_space<vmem>>, vector<8x128xf32>,
    return
  }
}

</mosaic_0001>

<llo_original>
// kernel: addmm_cat.1
$region0: #{addmm_cat.1}
  #allocation0 [shape = 'u32[]', space=smem, size = 0x4, offset = 0x4, fixed_abs, tag = 'smem constant byte address 0x4 - core index']
  #allocation1 [shape = 'u32[144,128]{1,0:T(1,128)}', space=vmem, size = 0x12000, scoped, tag = 'internal scratch']
  %s0 = inlined_call_operand.vmem [shape: f32[1,128], index: 0, kind: input, shape index: {}]
  %s1 = inlined_call_operand.vmem [shape: f32[8,64], index: 1, kind: input, shape index: {}]
  %s2 = inlined_call_operand.vmem [shape: f32[64,128], index: 2, kind: input, shape index: {}]
  %s3 = inlined_call_operand.hbm [shape: f32[8,128], index: 3, kind: output, shape index: {}]
  %s4 = sld [smem:[#allocation0]]
  $region22: #{addmm_cat.1} parent=0
    _
  %s6 = ssub.s32 1, %s4
  %s7 = scalar_select 0, %s6, %s4
  $region1: #{addmm_cat.1} parent=0
    #allocation2 [shape = 'u8[4096]{0}', space=vmem, size = 0x1000, scoped, tag = 'output window, operand 0, single buffered']
    #allocation3 [shape = 's32[1]{0}', space=sflag, size = 0x4, scoped, tag = 'scoped memory for addmm_cat.1']
    %8 = vsyncpa [#allocation3], 0
    // Predicated region
    $region2: #{addmm_cat.1} parent=1 // pred_check
      _
    $region3: #{addmm_cat.1} parent=1 // pred_check_branch
      %10 = sbr.rel (0) target = $region5
    $region4: #{addmm_cat.1} parent=1 // pred_region
      _
    $region5: #{addmm_cat.1} parent=1 // pred_fallthru
      _
    // Predicated region
    $region6: #{addmm_cat.1} parent=1 // pred_check
      _
    $region7: #{addmm_cat.1} parent=1 // pred_check_branch
      %12 = sbr.rel (0) target = $region9
    $region8: #{addmm_cat.1} parent=1 // pred_region
      _
    $region9: #{addmm_cat.1} parent=1 // pred_fallthru
      _
    // Predicated region
    $region10: #{addmm_cat.1} parent=1 // pred_check
      _
    $region11: #{addmm_cat.1} parent=1 // pred_check_branch
      %14 = sbr.rel (0) target = $region13
    $region12: #{addmm_cat.1} parent=1 // pred_region
      _
    $region13: #{addmm_cat.1} parent=1 // pred_fallthru
      _
    %v15 = vld [vmem:[%s1] sm:$0xff]
    %v16 = vld [vmem:[%s2] sm:$0xff]
    %v17 = vld [vmem:[%s2 + $0x8] sm:$0xff]
    %v18 = vld [vmem:[%s2 + $0x10] sm:$0xff]
    %v19 = vld [vmem:[%s2 + $0x18] sm:$0xff]
    %v20 = vld [vmem:[%s2 + $0x20] sm:$0xff]
    %v21 = vld [vmem:[%s2 + $0x28] sm:$0xff]
    %v22 = vld [vmem:[%s2 + $0x30] sm:$0xff]
    %v23 = vld [vmem:[%s2 + $0x38] sm:$0xff]
    %v24 = vld [vmem:[%s0] sm:$0x1]
    %v26 = vlaneseq
    %v27 = vshrl.u32 %v26, 7
    %v28 = vsub.s32 0, %v27
    %v29 = vrot.slane %v24, %v28
    %vm31 = vcmask 523264
    %v33 = vsel %vm31, %v15, 0
    %35 = vmatprep.subr.mxu0 0.0
    %36 = vmatpush1.msra.mxu0 %v16
    %37 = vmatprep.subr.mxu0 0.0
    %38 = vmatpush1.msra.mxu0 %v17
    %39 = vmatprep.subr.mxu0 0.0
    %40 = vmatpush1.msra.mxu0 %v18
    %41 = vmatprep.subr.mxu0 0.0
    %42 = vmatpush1.msra.mxu0 %v19
    %43 = vmatprep.subr.mxu0 0.0
    %44 = vmatpush1.msra.mxu0 %v20
    %45 = vmatprep.subr.mxu0 0.0
    %46 = vmatpush1.msra.mxu0 %v21
    %47 = vmatprep.subr.mxu0 0.0
    %48 = vmatpush1.msra.mxu0 %v22
    %49 = vmatprep.subr.mxu0 0.0
    %50 = vmatpush1.msra.mxu0 %v23
    %51 = vmatprep.subr.mxu0 0.0
    %52 = vmatpush1.msra.mxu0 0.0
    %53 = vmatprep.subr.mxu0 0.0
    %54 = vmatpush1.msra.mxu0 0.0
    %55 = vmatprep.subr.mxu0 0.0
    %56 = vmatpush1.msra.mxu0 0.0
    %57 = vmatprep.subr.mxu0 0.0
    %58 = vmatpush1.msra.mxu0 0.0
    %59 = vmatprep.subr.mxu0 0.0
    %60 = vmatpush1.msra.mxu0 0.0
    %61 = vmatprep.subr.mxu0 0.0
    %62 = vmatpush1.msra.mxu0 0.0
    %63 = vmatprep.subr.mxu0 0.0
    %64 = vmatpush1.msra.mxu0 0.0
    %65 = vmatprep.subr.mxu0 0.0
    %66 = vmatpush1.msra.mxu0 0.0
    %67 = vmatprep.subr.mxu0 0.0
    %68 = vmatpush1.msra.mxu0 0.0
    %69 = vmatprep.subr.mxu0 0.0
    %70 = vmatpush1.msra.mxu0 0.0
    %71 = vmatprep.subr.mxu0 0.0
    %72 = vmatpush1.msra.mxu0 0.0
    %73 = vmatprep.subr.mxu0 0.0
    %74 = vmatpush1.msra.mxu0 0.0
    %75 = vmatprep.subr.mxu0 0.0
    %76 = vmatpush1.msra.mxu0 0.0
    %77 = vmatprep.subr.mxu0 0.0
    %78 = vmatpush1.msra.mxu0 0.0
    %79 = vmatprep.subr.mxu0 0.0
    %80 = vmatpush1.msra.mxu0 0.0
    %81 = vmatprep.subr.mxu0 0.0
    %82 = vmatpush1.msra.mxu0 0.0
    %83 = vmatprep.subr.mxu0 0.0
    %84 = vmatpush1.msra.mxu0 0.0
    %85 = vmatprep.subr.mxu0 0.0
    %86 = vmatpush1.msra.mxu0 0.0
    %87 = vmatprep.subr.mxu0 0.0
    %88 = vmatpush1.msra.mxu0 0.0
    %89 = vmatprep.subr.mxu0 0.0
    %90 = vmatpush1.msra.mxu0 0.0
    %91 = vmatprep.subr.mxu0 0.0
    %92 = vmatpush1.msra.mxu0 0.0
    %93 = vmatprep.subr.mxu0 0.0
    %94 = vmatpush1.msra.mxu0 0.0
    %95 = vmatprep.subr.mxu0 0.0
    %96 = vmatpush1.msra.mxu0 0.0
    %97 = vmatprep.subr.mxu0 0.0
    %98 = vmatpush1.msra.mxu0 0.0
    %99 = vmatprep.mubr.f32.mxu0 0.0
    %100 = vmatmul.mubr.f32.gmra.mrb[0].mxu0 %v33
    %v101 = vpop.f32.mrb[0].mxu0
    %v102 = vadd.f32 %v29, %v101
    %v103 = vpop.f32.mrb[0].mxu0
    %104 = vdwg.mxu0
    %105 = vst [vmem:[#allocation2] sm:$0xff] %v102
    // Predicated region
    $region14: #{addmm_cat.1} parent=1 // pred_check
      _
    $region15: #{addmm_cat.1} parent=1 // pred_check_branch
      %107 = sbr.rel (0) target = $region17
    $region16: #{addmm_cat.1} parent=1 // pred_region
      %s109 = ssub.s32 128, 128
      %110 = vsyncadd [#allocation3], %s109
      %s112 = sshll.u32 [#allocation2], 4
      %s113 = int_to_ptr.vmem [resolvable:$true] %s112
      %115 = dma.vmem_to_hbm [thread:$0]  %s113, 128, %s3, [#allocation3]
    $region17: #{addmm_cat.1} parent=1 // pred_fallthru
      _
    // Predicated region
    $region18: #{addmm_cat.1} parent=1 // pred_check
      _
    $region19: #{addmm_cat.1} parent=1 // pred_check_branch
      %117 = sbr.rel (0) target = $region21
    $region20: #{addmm_cat.1} parent=1 // pred_region
      %118 = dma.done [#allocation3], 128
    $region21: #{addmm_cat.1} parent=1 // pred_fallthru
      _
    %119 = vsyncpa [#allocation3], 1

</llo_original>
